<compile_context>
chip_gen: v6e
topology: v6e:2x2x1
jax: 0.10.0
libtpu: 0.0.40
codegen_flags: <defaults>
</compile_context>

<pallas_src>
import functools

import jax
import jax.numpy as jnp
from jax import lax
from jax.experimental import pallas as pl
from jax.experimental.pallas import tpu as pltpu

BN_EPS = 1e-5
LANE = 128


def _round_up(x, m):
    return (x + m - 1) // m * m


# ---------------------------------------------------------------------------
# Pass 1: Linear + per-feature sum / sum-of-squares accumulation
# ---------------------------------------------------------------------------
def _linear_stats_kernel(x_ref, w_ref, b_ref, y_ref, sum_ref, sq_ref,
                         *, tile_n, n_valid):
    i = pl.program_id(0)

    @pl.when(i == 0)
    def _():
        sum_ref[...] = jnp.zeros_like(sum_ref)
        sq_ref[...] = jnp.zeros_like(sq_ref)

    # MXU matmul with f32 accumulation; operands stay in their input dtype
    # (bf16 callers feed the MXU natively — no explicit up-cast).
    y = jnp.dot(x_ref[...], w_ref[...], preferred_element_type=jnp.float32)
    y = y + b_ref[...].astype(jnp.float32)                       # (tile_n, OUT_PAD)

    y_ref[...] = y.astype(y_ref.dtype)

    # Mask batch-padding rows so they don't pollute the batch statistics.
    row = i * tile_n + lax.broadcasted_iota(jnp.int32, (tile_n, 1), 0)
    y_stat = jnp.where(row < n_valid, y, 0.0)

    sum_ref[...] += jnp.sum(y_stat, axis=0, keepdims=True)
    sq_ref[...] += jnp.sum(y_stat * y_stat, axis=0, keepdims=True)


# ---------------------------------------------------------------------------
# Pass 2: BatchNorm1d (batch stats, biased var) + affine + ReLU
# ---------------------------------------------------------------------------
def _bn_relu_kernel(y_ref, sum_ref, sq_ref, gamma_ref, beta_ref, o_ref, *, inv_n):
    y = y_ref[...].astype(jnp.float32)
    mean = sum_ref[...] * inv_n                                  # (1, OUT_PAD)
    var = jnp.maximum(sq_ref[...] * inv_n - mean * mean, 0.0)    # E[y^2] - mean^2
    scale = gamma_ref[...].astype(jnp.float32) * lax.rsqrt(var + BN_EPS)
    shift = beta_ref[...].astype(jnp.float32) - mean * scale
    o_ref[...] = jnp.maximum(y * scale + shift, 0.0).astype(o_ref.dtype)


# ---------------------------------------------------------------------------
# Wrapper
# ---------------------------------------------------------------------------
def fcblock_forward(x, w, b, gamma, beta, *, tile_n=128,
                    vmem_limit_bytes=32 * 1024 * 1024):
    """FCBlock forward.

    x:              (N, in_size)
    w:              (in_size, out_size)  -- PyTorch Linear weight, pre-transposed
    b, gamma, beta: (out_size,) or (1, out_size)
    Returns (N, out_size) in x.dtype.
    """
    n, in_size = x.shape
    out_size = w.shape[1]
    act_dtype = x.dtype

    in_pad = _round_up(in_size, LANE)
    out_pad = _round_up(out_size, LANE)
    n_pad = _round_up(n, tile_n)
    n_tiles = n_pad // tile_n

    # Zero padding keeps the matmul exact; padded feature columns are sliced
    # off at the end, padded batch rows are masked out of the statistics.
    xp = jnp.pad(x, ((0, n_pad - n), (0, in_pad - in_size)))
    wp = jnp.pad(w, ((0, in_pad - in_size), (0, out_pad - out_size)))
    bp = jnp.pad(jnp.reshape(b, (1, out_size)).astype(jnp.float32),
                 ((0, 0), (0, out_pad - out_size)))
    gp = jnp.pad(jnp.reshape(gamma, (1, out_size)).astype(jnp.float32),
                 ((0, 0), (0, out_pad - out_size)))
    btp = jnp.pad(jnp.reshape(beta, (1, out_size)).astype(jnp.float32),
                  ((0, 0), (0, out_pad - out_size)))

    full = lambda i: (0, 0)
    tiled = lambda i: (i, 0)

    # ---- Pass 1: Linear + stats accumulation (batch axis is a reduction) ----
    y, ysum, ysq = pl.pallas_call(
        functools.partial(_linear_stats_kernel, tile_n=tile_n, n_valid=n),
        grid=(n_tiles,),
        in_specs=[
            pl.BlockSpec((tile_n, in_pad), tiled),     # x tile, double-buffered
            pl.BlockSpec((in_pad, out_pad), full),     # W resident
            pl.BlockSpec((1, out_pad), full),          # bias resident
        ],
        out_specs=[
            pl.BlockSpec((tile_n, out_pad), tiled),    # y (pre-BN activations)
            pl.BlockSpec((1, out_pad), full),          # sum accumulator
            pl.BlockSpec((1, out_pad), full),          # sumsq accumulator
        ],
        out_shape=[
            jax.ShapeDtypeStruct((n_pad, out_pad), act_dtype),
            jax.ShapeDtypeStruct((1, out_pad), jnp.float32),
            jax.ShapeDtypeStruct((1, out_pad), jnp.float32),
        ],
        compiler_params=pltpu.CompilerParams(
            dimension_semantics=("arbitrary",),        # stats accumulate sequentially
            vmem_limit_bytes=vmem_limit_bytes,
        ),
    )(xp, wp, bp)

    # ---- Pass 2: normalize + affine + ReLU (fully parallel over tiles) ----
    out = pl.pallas_call(
        functools.partial(_bn_relu_kernel, inv_n=1.0 / n),
        grid=(n_tiles,),
        in_specs=[
            pl.BlockSpec((tile_n, out_pad), tiled),
            pl.BlockSpec((1, out_pad), full),
            pl.BlockSpec((1, out_pad), full),
            pl.BlockSpec((1, out_pad), full),
            pl.BlockSpec((1, out_pad), full),
        ],
        out_specs=pl.BlockSpec((tile_n, out_pad), tiled),
        out_shape=jax.ShapeDtypeStruct((n_pad, out_pad), act_dtype),
        compiler_params=pltpu.CompilerParams(
            dimension_semantics=("parallel",),         # megacore split on v7x
            vmem_limit_bytes=vmem_limit_bytes,
        ),
    )(y, ysum, ysq, gp, btp)

    return out[:n, :out_size]


# ---------------------------------------------------------------------------
# Pure-JAX reference (PyTorch training-mode semantics)
# ---------------------------------------------------------------------------
def _reference(x, w, b, gamma, beta):
    y = jnp.dot(x, w, precision=lax.Precision.HIGHEST) + jnp.reshape(b, (1, -1))
    mean = jnp.mean(y, axis=0, keepdims=True)
    var = jnp.mean((y - mean) ** 2, axis=0, keepdims=True)
    y_hat = (y - mean) / jnp.sqrt(var + BN_EPS)
    out = jnp.reshape(gamma, (1, -1)) * y_hat + jnp.reshape(beta, (1, -1))
    return jnp.maximum(out, 0.0)


if __name__ == "__main__":
    # Small, deliberately non-aligned shapes to exercise lane padding and
    # batch-tile masking: N=200 (pads to 256), in=64 / out=96 (pad to 128).
    N, IN_SIZE, OUT_SIZE = 200, 64, 96

    key = jax.random.PRNGKey(0)
    kx, kw, kb = jax.random.split(key, 3)

    x = jax.random.normal(kx, (N, IN_SIZE), dtype=jnp.float32)

    # Linear-style uniform init; BN gamma=1, beta=0 (fresh-module defaults).
    bound = 1.0 / jnp.sqrt(jnp.float32(IN_SIZE))
    w = jax.random.uniform(kw, (IN_SIZE, OUT_SIZE), jnp.float32, -bound, bound)
    b = jax.random.uniform(kb, (1, OUT_SIZE), jnp.float32, -bound, bound)
    gamma = jnp.ones((1, OUT_SIZE), jnp.float32)
    beta = jnp.zeros((1, OUT_SIZE), jnp.float32)

    out = jax.block_until_ready(fcblock_forward(x, w, b, gamma, beta))
    ref = _reference(x, w, b, gamma, beta)

    assert out.shape == (N, OUT_SIZE)
    assert jnp.allclose(out, ref, atol=1e-3, rtol=1e-3), float(
        jnp.max(jnp.abs(out - ref)))

    print("KERNEL_OK")
</pallas_src>

<mosaic_0001>
module attributes {stable_mosaic.version = 11 : i64} {
  func.func @_linear_stats_kernel(%arg0: i32, %arg1: memref<128x128xf32, #tpu.memory_space<vmem>>, %arg2: memref<128x128xf32, #tpu.memory_space<vmem>>, %arg3: memref<1x128xf32, #tpu.memory_space<vmem>>, %arg4: memref<128x128xf32, #tpu.memory_space<vmem>>, %arg5: memref<1x128xf32, #tpu.memory_space<vmem>>, %arg6: memref<1x128xf32, #tpu.memory_space<vmem>>) attributes {dimension_semantics = [#tpu.dimension_semantics<arbitrary>], iteration_bounds = array<i64: 2>, scalar_prefetch = 0 : i64, scratch_operands = 0 : i64, tpu.core_type = #tpu.core_type<tc>, window_params = [{transform_indices = @transform_0, window_bounds = array<i64: 128, 128>}, {pipeline_mode = #tpu.pipeline_mode<synchronous>, transform_indices = @transform_1, window_bounds = array<i64: 128, 128>}, {pipeline_mode = #tpu.pipeline_mode<synchronous>, transform_indices = @transform_2, window_bounds = array<i64: 1, 128>}, {transform_indices = @transform_3, window_bounds = array<i64: 128, 128>}, {pipeline_mode = #tpu.pipeline_mode<synchronous>, transform_indices = @transform_4, window_bounds = array<i64: 1, 128>}, {pipeline_mode = #tpu.pipeline_mode<synchronous>, transform_indices = @transform_5, window_bounds = array<i64: 1, 128>}]} {
    %c0_i32 = arith.constant 0 : i32
    %0 = arith.cmpi eq, %arg0, %c0_i32 : i32
    %1 = arith.extui %0 : i1 to i32
    %c0_i32_0 = arith.constant 0 : i32
    %2 = arith.cmpi ne, %1, %c0_i32_0 : i32
    scf.if %2 {
      %cst_19 = arith.constant 0.000000e+00 : f32
      %31 = vector.broadcast %cst_19 : f32 to vector<1x128xf32>
      %c0_20 = arith.constant 0 : index
      %c0_21 = arith.constant 0 : index
      %32 = vector.load %arg5[%c0_20, %c0_21] : memref<1x128xf32, #tpu.memory_space<vmem>>, vector<1x128xf32>
      tpu.vector_store %arg5[%c0_20, %c0_21], %31 {strides = array<i32>} : memref<1x128xf32, #tpu.memory_space<vmem>>, vector<1x128xf32>,
      %cst_22 = arith.constant 0.000000e+00 : f32
      %33 = vector.broadcast %cst_22 : f32 to vector<1x128xf32>
      %c0_23 = arith.constant 0 : index
      %c0_24 = arith.constant 0 : index
      %34 = vector.load %arg6[%c0_23, %c0_24] : memref<1x128xf32, #tpu.memory_space<vmem>>, vector<1x128xf32>
      tpu.vector_store %arg6[%c0_23, %c0_24], %33 {strides = array<i32>} : memref<1x128xf32, #tpu.memory_space<vmem>>, vector<1x128xf32>,
    } else {
    }
    %c0 = arith.constant 0 : index
    %c0_1 = arith.constant 0 : index
    %3 = vector.load %arg1[%c0, %c0_1] : memref<128x128xf32, #tpu.memory_space<vmem>>, vector<128x128xf32>
    %c0_2 = arith.constant 0 : index
    %c0_3 = arith.constant 0 : index
    %4 = vector.load %arg2[%c0_2, %c0_3] : memref<128x128xf32, #tpu.memory_space<vmem>>, vector<128x128xf32>
    %cst = arith.constant dense<0.000000e+00> : vector<128x128xf32>
    %5 = tpu.matmul %3, %4, %cst {dimension_numbers = #tpu.dot_dimension_numbers<[1], [0], [0], [1], [0, 0, 1, 1], [], []>} : vector<128x128xf32>, vector<128x128xf32>, vector<128x128xf32> -> vector<128x128xf32>
    %c0_4 = arith.constant 0 : index
    %c0_5 = arith.constant 0 : index
    %6 = vector.load %arg3[%c0_4, %c0_5] : memref<1x128xf32, #tpu.memory_space<vmem>>, vector<1x128xf32>
    %7 = vector.broadcast %6 : vector<1x128xf32> to vector<128x128xf32>
    %8 = arith.addf %5, %7 : vector<128x128xf32>
    %c0_6 = arith.constant 0 : index
    %c0_7 = arith.constant 0 : index
    %9 = vector.load %arg4[%c0_6, %c0_7] : memref<128x128xf32, #tpu.memory_space<vmem>>, vector<128x128xf32>
    tpu.vector_store %arg4[%c0_6, %c0_7], %8 {strides = array<i32>} : memref<128x128xf32, #tpu.memory_space<vmem>>, vector<128x128xf32>,
    %c128_i32 = arith.constant 128 : i32
    %10 = arith.muli %arg0, %c128_i32 : i32
    %11 = tpu.iota {dimensions = array<i32: 0>} : vector<128x1xi32>
    %12 = vector.broadcast %10 : i32 to vector<128x1xi32>
    %13 = arith.addi %12, %11 : vector<128x1xi32>
    %c200_i32 = arith.constant 200 : i32
    %14 = vector.broadcast %c200_i32 : i32 to vector<128x1xi32>
    %15 = arith.cmpi slt, %13, %14 : vector<128x1xi32>
    %cst_8 = arith.constant 0.000000e+00 : f32
    %16 = vector.shape_cast %15 : vector<128x1xi1> to vector<128x1xi1>
    %17 = vector.broadcast %16 : vector<128x1xi1> to vector<128x128xi1>
    %18 = vector.broadcast %cst_8 : f32 to vector<128x128xf32>
    %19 = arith.select %17, %8, %18 : vector<128x128xi1>, vector<128x128xf32>
    %c0_9 = arith.constant 0 : index
    %c0_10 = arith.constant 0 : index
    %20 = vector.load %arg5[%c0_9, %c0_10] : memref<1x128xf32, #tpu.memory_space<vmem>>, vector<1x128xf32>
    %cst_11 = arith.constant dense<0.000000e+00> : vector<128xf32>
    %21 = vector.multi_reduction <add>, %19, %cst_11 [0] : vector<128x128xf32> to vector<128xf32>
    %22 = vector.shape_cast %21 : vector<128xf32> to vector<1x128xf32>
    %23 = arith.addf %20, %22 : vector<1x128xf32>
    %c0_12 = arith.constant 0 : index
    %c0_13 = arith.constant 0 : index
    %24 = vector.load %arg5[%c0_12, %c0_13] : memref<1x128xf32, #tpu.memory_space<vmem>>, vector<1x128xf32>
    tpu.vector_store %arg5[%c0_12, %c0_13], %23 {strides = array<i32>} : memref<1x128xf32, #tpu.memory_space<vmem>>, vector<1x128xf32>,
    %c0_14 = arith.constant 0 : index
    %c0_15 = arith.constant 0 : index
    %25 = vector.load %arg6[%c0_14, %c0_15] : memref<1x128xf32, #tpu.memory_space<vmem>>, vector<1x128xf32>
    %26 = arith.mulf %19, %19 : vector<128x128xf32>
    %cst_16 = arith.constant dense<0.000000e+00> : vector<128xf32>
    %27 = vector.multi_reduction <add>, %26, %cst_16 [0] : vector<128x128xf32> to vector<128xf32>
    %28 = vector.shape_cast %27 : vector<128xf32> to vector<1x128xf32>
    %29 = arith.addf %25, %28 : vector<1x128xf32>
    %c0_17 = arith.constant 0 : index
    %c0_18 = arith.constant 0 : index
    %30 = vector.load %arg6[%c0_17, %c0_18] : memref<1x128xf32, #tpu.memory_space<vmem>>, vector<1x128xf32>
    tpu.vector_store %arg6[%c0_17, %c0_18], %29 {strides = array<i32>} : memref<1x128xf32, #tpu.memory_space<vmem>>, vector<1x128xf32>,
    return
  }
  func.func @transform_0(%arg0: i32) -> (i32, i32) {
    %c0_i32 = arith.constant 0 : i32
    %c0_i32_0 = arith.constant 0 : i32
    return %arg0, %c0_i32 : i32, i32
  }
  func.func @transform_1(%arg0: i32) -> (i32, i32) {
    %c0_i32 = arith.constant 0 : i32
    %c0_i32_0 = arith.constant 0 : i32
    %c0_i32_1 = arith.constant 0 : i32
    return %c0_i32, %c0_i32_0 : i32, i32
  }
  func.func @transform_2(%arg0: i32) -> (i32, i32) {
    %c0_i32 = arith.constant 0 : i32
    %c0_i32_0 = arith.constant 0 : i32
    %c0_i32_1 = arith.constant 0 : i32
    return %c0_i32, %c0_i32_0 : i32, i32
  }
  func.func @transform_3(%arg0: i32) -> (i32, i32) {
    %c0_i32 = arith.constant 0 : i32
    %c0_i32_0 = arith.constant 0 : i32
    return %arg0, %c0_i32 : i32, i32
  }
  func.func @transform_4(%arg0: i32) -> (i32, i32) {
    %c0_i32 = arith.constant 0 : i32
    %c0_i32_0 = arith.constant 0 : i32
    %c0_i32_1 = arith.constant 0 : i32
    return %c0_i32, %c0_i32_0 : i32, i32
  }
  func.func @transform_5(%arg0: i32) -> (i32, i32) {
    %c0_i32 = arith.constant 0 : i32
    %c0_i32_0 = arith.constant 0 : i32
    %c0_i32_1 = arith.constant 0 : i32
    return %c0_i32, %c0_i32_0 : i32, i32
  }
}

</mosaic_0001>

<llo_original>
// kernel: tpu_custom_call.1
$region0: #{tpu_custom_call.1}
  #allocation0 [shape = 'u32[]', space=smem, size = 0x4, offset = 0x4, fixed_abs, tag = 'smem constant byte address 0x4 - core index']
  #allocation1 [shape = 'u32[144,128]{1,0:T(1,128)}', space=vmem, size = 0x12000, scoped, tag = 'internal scratch']
  %s0 = inlined_call_operand.hbm [shape: f32[256,128], index: 0, kind: input, shape index: {}]
  %s1 = inlined_call_operand.hbm [shape: f32[128,128], index: 1, kind: input, shape index: {}]
  %s2 = inlined_call_operand.vmem [shape: f32[1,128], index: 2, kind: input, shape index: {}]
  %s3 = inlined_call_operand.hbm [shape: f32[256,128], index: 3, kind: output, shape index: {0}]
  %s4 = inlined_call_operand.hbm [shape: f32[1,128], index: 4, kind: output, shape index: {1}]
  %s5 = inlined_call_operand.hbm [shape: f32[1,128], index: 5, kind: output, shape index: {2}]
  %6 = xla_tuple %s3, %s4, %s5
  %s7 = sld [smem:[#allocation0]]
  $region73: #{tpu_custom_call.1} parent=0
    _
  %s9 = ssub.s32 1, %s7
  %s10 = scalar_select 0, %s9, %s7
  $region1: #{tpu_custom_call.1} parent=0
    #allocation2 [shape = 'u8[131072]{0}', space=vmem, size = 0x20000, scoped, tag = 'input window, operand 0']
    #allocation3 [shape = 's32[2]{0}', space=sflag, size = 0x8, scoped, tag = 'scoped memory for tpu_custom_call.1']
    #allocation4 [shape = 's32[2]{0}', space=sflag, size = 0x8, scoped, tag = 'scoped memory for tpu_custom_call.1']
    #allocation5 [shape = 'u8[65536]{0}', space=vmem, size = 0x10000, scoped, tag = 'input window, operand 1, single buffered']
    #allocation6 [shape = 's32[1]{0}', space=sflag, size = 0x4, scoped, tag = 'scoped memory for tpu_custom_call.1']
    #allocation7 [shape = 'u8[131072]{0}', space=vmem, size = 0x20000, scoped, tag = 'output window, operand 0']
    #allocation8 [shape = 'u8[512]{0}', space=vmem, size = 0x400, scoped, tag = 'output window, operand 1, single buffered']
    #allocation9 [shape = 's32[1]{0}', space=sflag, size = 0x4, scoped, tag = 'scoped memory for tpu_custom_call.1']
    #allocation10 [shape = 'u8[512]{0}', space=vmem, size = 0x400, scoped, tag = 'output window, operand 2, single buffered']
    %11 = vsyncpa [#allocation3], 0
    %s12 = scalar_lea.sflag [#allocation3], 1
    %13 = vsyncpa %s12, 0
    %14 = vsyncpa [#allocation6], 0
    %15 = vsyncpa [#allocation4], 0
    %s16 = scalar_lea.sflag [#allocation4], 1
    %17 = vsyncpa %s16, 0
    %18 = vsyncpa [#allocation9], 0
    loop: start=0, step=1, limit=4
    $region2: #{tpu_custom_call.1} parent=1 // loop_pre_header
      _
    $region3: #{tpu_custom_call.1} parent=1 // loop_header
      %s20 = sphi 0, %s24
      %p21 = scmp.ge.s32.totalorder %s20, 4
      %s30 = sphi 0, %s32
      %s33 = sphi 0, %s30
      %s34 = sphi 0, %s33
      %s50 = sphi 0, %s34
      %s54 = sphi 0, %s54
      %s56 = sphi 0, %s54
      %s57 = sphi 0, %s56
      %s71 = sphi 0, %s57
      %s75 = sphi 0, %s75
      %s77 = sphi 0, %s75
      %s78 = sphi 0, %s77
      %s92 = sphi 0, %s78
      %s98 = sphi 0, %s100
      %s101 = sphi 0, %s98
      %s102 = sphi 0, %s101
      %s118 = sphi 0, %s102
      %s122 = sphi 0, %s122
      %s124 = sphi 0, %s122
      %s125 = sphi 0, %s124
      %s139 = sphi 0, %s125
      %s143 = sphi 0, %s143
      %s145 = sphi 0, %s143
      %s146 = sphi 0, %s145
      %s160 = sphi 0, %s146
    $region4: #{tpu_custom_call.1} parent=1 // loop_header_branch
      %23 = sbr.rel (%p21) target = $region8
    $region5: #{tpu_custom_call.1} parent=1 // loop_body
      %s25 = ssub.s32 %s20, 1
      %s26 = ssub.s32 %s20, 2
      %s27 = sadd.s32 %s20, 1
      %s28 = ssub.s32 %s20, %s27
      %p29 = scmp.eq.s32.totalorder %s28, 0
      %s31 = sadd.s32 %s30, 1
      %s32 = scalar_select %p29, %s30, %s31
      %p35 = pneg %p29
      %p36 = scmp.eq.s32.totalorder %s20, 1
      %p37 = por %p35, %p36
      %p38 = scmp.ne.s32.totalorder %s30, %s33
      %p39 = scmp.eq.s32.totalorder %s20, 0
      %p40 = por %p38, %p39
      %p41 = scmp.ne.s32.totalorder %s30, %s33
      %p42 = scmp.eq.s32.totalorder %s25, 1
      %p43 = por %p41, %p42
      %p44 = scmp.ne.s32.totalorder %s33, %s34
      %p45 = scmp.eq.s32.totalorder %s25, 0
      %p46 = por %p44, %p45
      %p47 = scmp.ne.s32.totalorder %s33, %s34
      %p48 = scmp.eq.s32.totalorder %s26, 1
      %p49 = por %p47, %p48
      %p51 = scmp.ne.s32.totalorder %s34, %s50
      %p52 = scmp.eq.s32.totalorder %s26, 0
      %p53 = por %p51, %p52
      %s55 = sadd.s32 %s54, 1
      %p58 = scmp.eq.s32.totalorder %s20, 1
      %p59 = scmp.ne.s32.totalorder %s54, %s56
      %p60 = scmp.eq.s32.totalorder %s20, 0
      %p61 = por %p59, %p60
      %p62 = scmp.ne.s32.totalorder %s54, %s56
      %p63 = scmp.eq.s32.totalorder %s25, 1
      %p64 = por %p62, %p63
      %p65 = scmp.ne.s32.totalorder %s56, %s57
      %p66 = scmp.eq.s32.totalorder %s25, 0
      %p67 = por %p65, %p66
      %p68 = scmp.ne.s32.totalorder %s56, %s57
      %p69 = scmp.eq.s32.totalorder %s26, 1
      %p70 = por %p68, %p69
      %p72 = scmp.ne.s32.totalorder %s57, %s71
      %p73 = scmp.eq.s32.totalorder %s26, 0
      %p74 = por %p72, %p73
      %s76 = sadd.s32 %s75, 1
      %p79 = scmp.eq.s32.totalorder %s20, 1
      %p80 = scmp.ne.s32.totalorder %s75, %s77
      %p81 = scmp.eq.s32.totalorder %s20, 0
      %p82 = por %p80, %p81
      %p83 = scmp.ne.s32.totalorder %s75, %s77
      %p84 = scmp.eq.s32.totalorder %s25, 1
      %p85 = por %p83, %p84
      %p86 = scmp.ne.s32.totalorder %s77, %s78
      %p87 = scmp.eq.s32.totalorder %s25, 0
      %p88 = por %p86, %p87
      %p89 = scmp.ne.s32.totalorder %s77, %s78
      %p90 = scmp.eq.s32.totalorder %s26, 1
      %p91 = por %p89, %p90
      %p93 = scmp.ne.s32.totalorder %s78, %s92
      %p94 = scmp.eq.s32.totalorder %s26, 0
      %p95 = por %p93, %p94
      %s96 = ssub.s32 %s20, %s27
      %p97 = scmp.eq.s32.totalorder %s96, 0
      %s99 = sadd.s32 %s98, 1
      %s100 = scalar_select %p97, %s98, %s99
      %p103 = pneg %p97
      %p104 = scmp.eq.s32.totalorder %s20, 1
      %p105 = por %p103, %p104
      %p106 = scmp.ne.s32.totalorder %s98, %s101
      %p107 = scmp.eq.s32.totalorder %s20, 0
      %p108 = por %p106, %p107
      %p109 = scmp.ne.s32.totalorder %s98, %s101
      %p110 = scmp.eq.s32.totalorder %s25, 1
      %p111 = por %p109, %p110
      %p112 = scmp.ne.s32.totalorder %s101, %s102
      %p113 = scmp.eq.s32.totalorder %s25, 0
      %p114 = por %p112, %p113
      %p115 = scmp.ne.s32.totalorder %s101, %s102
      %p116 = scmp.eq.s32.totalorder %s26, 1
      %p117 = por %p115, %p116
      %p119 = scmp.ne.s32.totalorder %s102, %s118
      %p120 = scmp.eq.s32.totalorder %s26, 0
      %p121 = por %p119, %p120
      %s123 = sadd.s32 %s122, 1
      %p126 = scmp.eq.s32.totalorder %s20, 1
      %p127 = scmp.ne.s32.totalorder %s122, %s124
      %p128 = scmp.eq.s32.totalorder %s20, 0
      %p129 = por %p127, %p128
      %p130 = scmp.ne.s32.totalorder %s122, %s124
      %p131 = scmp.eq.s32.totalorder %s25, 1
      %p132 = por %p130, %p131
      %p133 = scmp.ne.s32.totalorder %s124, %s125
      %p134 = scmp.eq.s32.totalorder %s25, 0
      %p135 = por %p133, %p134
      %p136 = scmp.ne.s32.totalorder %s124, %s125
      %p137 = scmp.eq.s32.totalorder %s26, 1
      %p138 = por %p136, %p137
      %p140 = scmp.ne.s32.totalorder %s125, %s139
      %p141 = scmp.eq.s32.totalorder %s26, 0
      %p142 = por %p140, %p141
      %s144 = sadd.s32 %s143, 1
      %p147 = scmp.eq.s32.totalorder %s20, 1
      %p148 = scmp.ne.s32.totalorder %s143, %s145
      %p149 = scmp.eq.s32.totalorder %s20, 0
      %p150 = por %p148, %p149
      %p151 = scmp.ne.s32.totalorder %s143, %s145
      %p152 = scmp.eq.s32.totalorder %s25, 1
      %p153 = por %p151, %p152
      %p154 = scmp.ne.s32.totalorder %s145, %s146
      %p155 = scmp.eq.s32.totalorder %s25, 0
      %p156 = por %p154, %p155
      %p157 = scmp.ne.s32.totalorder %s145, %s146
      %p158 = scmp.eq.s32.totalorder %s26, 1
      %p159 = por %p157, %p158
      %p161 = scmp.ne.s32.totalorder %s146, %s160
      %p162 = scmp.eq.s32.totalorder %s26, 0
      %p163 = por %p161, %p162
      %p164 = scmp.le.s32.totalorder 1, %s20
      %p165 = scmp.lt.s32.totalorder %s20, 3
      %p166 = pnand %p164, %p165
      %p167 = pneg %p166
      // Predicated region
      $region9: #{tpu_custom_call.1} parent=5 // pred_check
        _
      $region10: #{tpu_custom_call.1} parent=5 // pred_check_branch
        %169 = sbr.rel (%p166) target = $region12
      $region11: #{tpu_custom_call.1} parent=5 // pred_region
        %s170 = ssub.s32 %s20, 1
        // Predicated region
        $region13: #{tpu_custom_call.1} parent=11 // pred_check
          %p171 = pneg %p67
        $region14: #{tpu_custom_call.1} parent=11 // pred_check_branch
          %173 = sbr.rel (%p171) target = $region16
        $region15: #{tpu_custom_call.1} parent=11 // pred_region
          %s175 = ssub.s32 2048, 2048
          %176 = vsyncadd [#allocation6], %s175
          %s177 = sshll.u32 [#allocation5], 4
          %s178 = int_to_ptr.vmem [resolvable:$true] %s177
          %183 = dma.hbm_to_vmem [thread:$0]  %s1, 2048, %s178, [#allocation6], 128, 128, 8
        $region16: #{tpu_custom_call.1} parent=11 // pred_fallthru
          _
        // Predicated region
        $region17: #{tpu_custom_call.1} parent=11 // pred_check
          %p184 = pneg %p88
        $region18: #{tpu_custom_call.1} parent=11 // pred_check_branch
          %186 = sbr.rel (%p184) target = $region20
        $region19: #{tpu_custom_call.1} parent=11 // pred_region
          _
        $region20: #{tpu_custom_call.1} parent=11 // pred_fallthru
          _
      $region12: #{tpu_custom_call.1} parent=5 // pred_fallthru
        _
      %p187 = scmp.lt.s32.totalorder %s20, 2
      // Predicated region
      $region21: #{tpu_custom_call.1} parent=5 // pred_check
        %p188 = pneg %p187
      $region22: #{tpu_custom_call.1} parent=5 // pred_check_branch
        %190 = sbr.rel (%p188) target = $region24
      $region23: #{tpu_custom_call.1} parent=5 // pred_region
        // Predicated region
        $region25: #{tpu_custom_call.1} parent=23 // pred_check
          %p191 = pneg %p40
        $region26: #{tpu_custom_call.1} parent=23 // pred_check_branch
          %193 = sbr.rel (%p191) target = $region28
        $region27: #{tpu_custom_call.1} parent=23 // pred_region
          %s194 = sand.u32 %s30, 1
          %s195 = scalar_lea.sflag [#allocation3], %s194
          %s196 = sand.u32 %s30, 1
          %s197 = smul.addr %s196, 128
          %s198 = scalar_lea.vmem [#allocation2], %s197
          %s199 = smul.u32 16, %s20
          %s201 = ssub.s32 2048, 2048
          %202 = vsyncadd %s195, %s201
          %s203 = smul.addr %s199, 128
          %s204 = scalar_lea.hbm %s0, %s203
          %s205 = sshll.u32 %s198, 4
          %s206 = int_to_ptr.vmem [resolvable:$true] %s205
          %211 = dma.hbm_to_vmem [thread:$0]  %s204, 2048, %s206, %s195, 128, 128, 8
        $region28: #{tpu_custom_call.1} parent=23 // pred_fallthru
          _
      $region24: #{tpu_custom_call.1} parent=5 // pred_fallthru
        _
      %p212 = scmp.le.s32.totalorder 1, %s20
      %p213 = scmp.lt.s32.totalorder %s20, 3
      %p214 = pnand %p212, %p213
      %p215 = pneg %p214
      // Predicated region
      $region29: #{tpu_custom_call.1} parent=5 // pred_check
        _
      $region30: #{tpu_custom_call.1} parent=5 // pred_check_branch
        %217 = sbr.rel (%p214) target = $region32
      $region31: #{tpu_custom_call.1} parent=5 // pred_region
        %s218 = ssub.s32 %s20, 1
        %s219 = sand.u32 %s33, 1
        %s220 = scalar_lea.sflag [#allocation3], %s219
        %s221 = sand.u32 %s33, 1
        %s222 = smul.addr %s221, 128
        %s223 = scalar_lea.vmem [#allocation2], %s222
        // Predicated region
        $region33: #{tpu_custom_call.1} parent=31 // pred_check
          %p224 = pneg %p46
        $region34: #{tpu_custom_call.1} parent=31 // pred_check_branch
          %226 = sbr.rel (%p224) target = $region36
        $region35: #{tpu_custom_call.1} parent=31 // pred_region
          %227 = dma.done %s220, 2048
        $region36: #{tpu_custom_call.1} parent=31 // pred_fallthru
          _
        // Predicated region
        $region37: #{tpu_custom_call.1} parent=31 // pred_check
          %p228 = pneg %p67
        $region38: #{tpu_custom_call.1} parent=31 // pred_check_branch
          %230 = sbr.rel (%p228) target = $region40
        $region39: #{tpu_custom_call.1} parent=31 // pred_region
          %231 = dma.done [#allocation6], 2048
        $region40: #{tpu_custom_call.1} parent=31 // pred_fallthru
          _
        %s232 = sand.u32 %s33, 1
        %s233 = scalar_lea.sflag [#allocation3], %s232
        %s234 = sand.u32 %s33, 1
        %s235 = smul.addr %s234, 128
        %s236 = scalar_lea.vmem [#allocation2], %s235
        %p237 = pneg %p46
        %p238 = pneg %p43
        %p239 = pneg %p67
        %p240 = pneg %p64
        %p241 = pneg %p88
        %p242 = pneg %p85
        %p243 = pneg %p114
        %p244 = pneg %p111
        %s245 = sand.u32 %s101, 1
        %s246 = scalar_lea.sflag [#allocation4], %s245
        %s247 = sand.u32 %s101, 1
        %s248 = smul.addr %s247, 128
        %s249 = scalar_lea.vmem [#allocation7], %s248
        %p250 = pneg %p135
        %p251 = pneg %p132
        %p252 = pneg %p156
        %p253 = pneg %p153
        %s254 = smul.u32 16, %s25
        %s255 = smul.u32 16, %s25
        %p256 = scmp.eq.s32.totalorder %s25, 0
        // Predicated region
        $region41: #{tpu_custom_call.1} parent=31 // pred_check
          %p257 = pneg %p256
        $region42: #{tpu_custom_call.1} parent=31 // pred_check_branch
          %259 = sbr.rel (%p257) target = $region44
        $region43: #{tpu_custom_call.1} parent=31 // pred_region
          %260 = vst [vmem:[#allocation8] sm:$0x1] 0.0
          %261 = vst [vmem:[#allocation10] sm:$0x1] 0.0
        $region44: #{tpu_custom_call.1} parent=31 // pred_fallthru
          _
        %v262 = vld [vmem:[%s223] sm:$0xff]
        %v263 = vld [vmem:[%s223 + $0x8] sm:$0xff]
        %v264 = vld [vmem:[%s223 + $0x10] sm:$0xff]
        %v265 = vld [vmem:[%s223 + $0x18] sm:$0xff]
        %v266 = vld [vmem:[%s223 + $0x20] sm:$0xff]
        %v267 = vld [vmem:[%s223 + $0x28] sm:$0xff]
        %v268 = vld [vmem:[%s223 + $0x30] sm:$0xff]
        %v269 = vld [vmem:[%s223 + $0x38] sm:$0xff]
        %v270 = vld [vmem:[%s223 + $0x40] sm:$0xff]
        %v271 = vld [vmem:[%s223 + $0x48] sm:$0xff]
        %v272 = vld [vmem:[%s223 + $0x50] sm:$0xff]
        %v273 = vld [vmem:[%s223 + $0x58] sm:$0xff]
        %v274 = vld [vmem:[%s223 + $0x60] sm:$0xff]
        %v275 = vld [vmem:[%s223 + $0x68] sm:$0xff]
        %v276 = vld [vmem:[%s223 + $0x70] sm:$0xff]
        %v277 = vld [vmem:[%s223 + $0x78] sm:$0xff]
        %v278 = vld [vmem:[#allocation5] sm:$0xff]
        %v279 = vld [vmem:[#allocation5 + $0x8] sm:$0xff]
        %v280 = vld [vmem:[#allocation5 + $0x10] sm:$0xff]
        %v281 = vld [vmem:[#allocation5 + $0x18] sm:$0xff]
        %v282 = vld [vmem:[#allocation5 + $0x20] sm:$0xff]
        %v283 = vld [vmem:[#allocation5 + $0x28] sm:$0xff]
        %v284 = vld [vmem:[#allocation5 + $0x30] sm:$0xff]
        %v285 = vld [vmem:[#allocation5 + $0x38] sm:$0xff]
        %v286 = vld [vmem:[#allocation5 + $0x40] sm:$0xff]
        %v287 = vld [vmem:[#allocation5 + $0x48] sm:$0xff]
        %v288 = vld [vmem:[#allocation5 + $0x50] sm:$0xff]
        %v289 = vld [vmem:[#allocation5 + $0x58] sm:$0xff]
        %v290 = vld [vmem:[#allocation5 + $0x60] sm:$0xff]
        %v291 = vld [vmem:[#allocation5 + $0x68] sm:$0xff]
        %v292 = vld [vmem:[#allocation5 + $0x70] sm:$0xff]
        %v293 = vld [vmem:[#allocation5 + $0x78] sm:$0xff]
        %v294 = vld [vmem:[%s2] sm:$0x1]
        %v296 = vlaneseq
        %v297 = vshrl.u32 %v296, 7
        %v298 = vsub.s32 0, %v297
        %v299 = vrot.slane %v294, %v298
        %301 = vmatprep.subr.mxu0 0.0
        %302 = vmatpush1.msra.mxu0 %v293
        %303 = vmatprep.subr.mxu0 0.0
        %304 = vmatpush1.msra.mxu0 %v292
        %305 = vmatprep.subr.mxu0 0.0
        %306 = vmatpush1.msra.mxu0 %v291
        %307 = vmatprep.subr.mxu0 0.0
        %308 = vmatpush1.msra.mxu0 %v290
        %309 = vmatprep.subr.mxu0 0.0
        %310 = vmatpush1.msra.mxu0 %v289
        %311 = vmatprep.subr.mxu0 0.0
        %312 = vmatpush1.msra.mxu0 %v288
        %313 = vmatprep.subr.mxu0 0.0
        %314 = vmatpush1.msra.mxu0 %v287
        %315 = vmatprep.subr.mxu0 0.0
        %316 = vmatpush1.msra.mxu0 %v286
        %317 = vmatprep.subr.mxu0 0.0
        %318 = vmatpush1.msra.mxu0 %v285
        %319 = vmatprep.subr.mxu0 0.0
        %320 = vmatpush1.msra.mxu0 %v284
        %321 = vmatprep.subr.mxu0 0.0
        %322 = vmatpush1.msra.mxu0 %v283
        %323 = vmatprep.subr.mxu0 0.0
        %324 = vmatpush1.msra.mxu0 %v282
        %325 = vmatprep.subr.mxu0 0.0
        %326 = vmatpush1.msra.mxu0 %v281
        %327 = vmatprep.subr.mxu0 0.0
        %328 = vmatpush1.msra.mxu0 %v280
        %329 = vmatprep.subr.mxu0 0.0
        %330 = vmatpush1.msra.mxu0 %v279
        %331 = vmatprep.subr.mxu0 0.0
        %332 = vmatpush1.msra.mxu0 %v278
        %333 = vmatprep.subr.mxu0 0.0
        %334 = vmatpush2.msra.mxu0 0.0
        %335 = vmatprep.subr.mxu0 0.0
        %336 = vmatpush2.msra.mxu0 0.0
        %337 = vmatprep.subr.mxu0 0.0
        %338 = vmatpush2.msra.mxu0 0.0
        %339 = vmatprep.subr.mxu0 0.0
        %340 = vmatpush2.msra.mxu0 0.0
        %341 = vmatprep.subr.mxu0 0.0
        %342 = vmatpush2.msra.mxu0 0.0
        %343 = vmatprep.subr.mxu0 0.0
        %344 = vmatpush2.msra.mxu0 0.0
        %345 = vmatprep.subr.mxu0 0.0
        %346 = vmatpush2.msra.mxu0 0.0
        %347 = vmatprep.subr.mxu0 0.0
        %348 = vmatpush2.msra.mxu0 0.0
        %349 = vmatprep.subr.mxu0 0.0
        %350 = vmatpush2.msra.mxu0 0.0
        %351 = vmatprep.subr.mxu0 0.0
        %352 = vmatpush2.msra.mxu0 0.0
        %353 = vmatprep.subr.mxu0 0.0
        %354 = vmatpush2.msra.mxu0 0.0
        %355 = vmatprep.subr.mxu0 0.0
        %356 = vmatpush2.msra.mxu0 0.0
        %357 = vmatprep.subr.mxu0 0.0
        %358 = vmatpush2.msra.mxu0 0.0
        %359 = vmatprep.subr.mxu0 0.0
        %360 = vmatpush2.msra.mxu0 0.0
        %361 = vmatprep.subr.mxu0 0.0
        %362 = vmatpush2.msra.mxu0 0.0
        %363 = vmatprep.subr.mxu0 0.0
        %364 = vmatpush2.msra.mxu0 0.0
        %365 = vmatprep.mubr.f32.mxu0 0.0
        %366 = vmatmul.mubr.f32.gmra.mxu0 %v262
        %v367 = vpop.f32.mrf.mxu0
        %v368 = vadd.f32 %v299, %v367
        %v369 = vpop.f32.mrf.mxu0
        %370 = vmatprep.mubr.f32.mxu0 0.0
        %371 = vmatmul.mubr.f32.gmra.mxu0 %v263
        %v372 = vpop.f32.mrf.mxu0
        %v373 = vadd.f32 %v299, %v372
        %v374 = vpop.f32.mrf.mxu0
        %375 = vmatprep.mubr.f32.mxu0 0.0
        %376 = vmatmul.mubr.f32.gmra.mxu0 %v264
        %v377 = vpop.f32.mrf.mxu0
        %v378 = vadd.f32 %v299, %v377
        %v379 = vpop.f32.mrf.mxu0
        %380 = vmatprep.mubr.f32.mxu0 0.0
        %381 = vmatmul.mubr.f32.gmra.mxu0 %v265
        %v382 = vpop.f32.mrf.mxu0
        %v383 = vadd.f32 %v299, %v382
        %v384 = vpop.f32.mrf.mxu0
        %385 = vmatprep.mubr.f32.mxu0 0.0
        %386 = vmatmul.mubr.f32.gmra.mxu0 %v266
        %v387 = vpop.f32.mrf.mxu0
        %v388 = vadd.f32 %v299, %v387
        %v389 = vpop.f32.mrf.mxu0
        %390 = vmatprep.mubr.f32.mxu0 0.0
        %391 = vmatmul.mubr.f32.gmra.mxu0 %v267
        %v392 = vpop.f32.mrf.mxu0
        %v393 = vadd.f32 %v299, %v392
        %v394 = vpop.f32.mrf.mxu0
        %395 = vmatprep.mubr.f32.mxu0 0.0
        %396 = vmatmul.mubr.f32.gmra.mxu0 %v268
        %v397 = vpop.f32.mrf.mxu0
        %v398 = vadd.f32 %v299, %v397
        %v399 = vpop.f32.mrf.mxu0
        %400 = vmatprep.mubr.f32.mxu0 0.0
        %401 = vmatmul.mubr.f32.gmra.mxu0 %v269
        %v402 = vpop.f32.mrf.mxu0
        %v403 = vadd.f32 %v299, %v402
        %v404 = vpop.f32.mrf.mxu0
        %405 = vmatprep.mubr.f32.mxu0 0.0
        %406 = vmatmul.mubr.f32.gmra.mxu0 %v270
        %v407 = vpop.f32.mrf.mxu0
        %v408 = vadd.f32 %v299, %v407
        %v409 = vpop.f32.mrf.mxu0
        %410 = vmatprep.mubr.f32.mxu0 0.0
        %411 = vmatmul.mubr.f32.gmra.mxu0 %v271
        %v412 = vpop.f32.mrf.mxu0
        %v413 = vadd.f32 %v299, %v412
        %v414 = vpop.f32.mrf.mxu0
        %415 = vmatprep.mubr.f32.mxu0 0.0
        %416 = vmatmul.mubr.f32.gmra.mxu0 %v272
        %v417 = vpop.f32.mrf.mxu0
        %v418 = vadd.f32 %v299, %v417
        %v419 = vpop.f32.mrf.mxu0
        %420 = vmatprep.mubr.f32.mxu0 0.0
        %421 = vmatmul.mubr.f32.gmra.mxu0 %v273
        %v422 = vpop.f32.mrf.mxu0
        %v423 = vadd.f32 %v299, %v422
        %v424 = vpop.f32.mrf.mxu0
        %425 = vmatprep.mubr.f32.mxu0 0.0
        %426 = vmatmul.mubr.f32.gmra.mxu0 %v274
        %v427 = vpop.f32.mrf.mxu0
        %v428 = vadd.f32 %v299, %v427
        %v429 = vpop.f32.mrf.mxu0
        %430 = vmatprep.mubr.f32.mxu0 0.0
        %431 = vmatmul.mubr.f32.gmra.mxu0 %v275
        %v432 = vpop.f32.mrf.mxu0
        %v433 = vadd.f32 %v299, %v432
        %v434 = vpop.f32.mrf.mxu0
        %435 = vmatprep.mubr.f32.mxu0 0.0
        %436 = vmatmul.mubr.f32.gmra.mxu0 %v276
        %v437 = vpop.f32.mrf.mxu0
        %v438 = vadd.f32 %v299, %v437
        %v439 = vpop.f32.mrf.mxu0
        %440 = vmatprep.mubr.f32.mxu0 0.0
        %441 = vmatmul.mubr.f32.gmra.mxu0 %v277
        %v442 = vpop.f32.mrf.mxu0
        %v443 = vadd.f32 %v299, %v442
        %v444 = vpop.f32.mrf.mxu0
        %445 = vdwg.mxu0
        %446 = vst [vmem:[%s249] sm:$0xff] %v368
        %447 = vst [vmem:[%s249 + $0x8] sm:$0xff] %v373
        %448 = vst [vmem:[%s249 + $0x10] sm:$0xff] %v378
        %449 = vst [vmem:[%s249 + $0x18] sm:$0xff] %v383
        %450 = vst [vmem:[%s249 + $0x20] sm:$0xff] %v388
        %451 = vst [vmem:[%s249 + $0x28] sm:$0xff] %v393
        %452 = vst [vmem:[%s249 + $0x30] sm:$0xff] %v398
        %453 = vst [vmem:[%s249 + $0x38] sm:$0xff] %v403
        %454 = vst [vmem:[%s249 + $0x40] sm:$0xff] %v408
        %455 = vst [vmem:[%s249 + $0x48] sm:$0xff] %v413
        %456 = vst [vmem:[%s249 + $0x50] sm:$0xff] %v418
        %457 = vst [vmem:[%s249 + $0x58] sm:$0xff] %v423
        %458 = vst [vmem:[%s249 + $0x60] sm:$0xff] %v428
        %459 = vst [vmem:[%s249 + $0x68] sm:$0xff] %v433
        %460 = vst [vmem:[%s249 + $0x70] sm:$0xff] %v438
        %461 = vst [vmem:[%s249 + $0x78] sm:$0xff] %v443
        %s462 = smul.u32 %s25, 128
        %v463 = vlaneseq
        %v464 = vshrl.u32 %v463, 7
        %v465 = vadd.s32 %v464, 8
        %v466 = vadd.s32 %v464, 16
        %v467 = vadd.s32 %v464, 24
        %v468 = vadd.s32 %v464, 32
        %v469 = vadd.s32 %v464, 40
        %v470 = vadd.s32 %v464, 48
        %v471 = vadd.s32 %v464, 56
        %v472 = vadd.s32 %v464, 64
        %v473 = vadd.s32 %v464, 72
        %v474 = vadd.s32 %v464, 80
        %v475 = vadd.s32 %v464, 88
        %v476 = vadd.s32 %v464, 96
        %v477 = vadd.s32 %v464, 104
        %v478 = vadd.s32 %v464, 112
        %v479 = vadd.s32 %v464, 120
        %v480 = vstv %s462
        %v481 = vadd.s32 %v480, %v464
        %v482 = vadd.s32 %v480, %v465
        %v483 = vadd.s32 %v480, %v466
        %v484 = vadd.s32 %v480, %v467
        %v485 = vadd.s32 %v480, %v468
        %v486 = vadd.s32 %v480, %v469
        %v487 = vadd.s32 %v480, %v470
        %v488 = vadd.s32 %v480, %v471
        %v489 = vadd.s32 %v480, %v472
        %v490 = vadd.s32 %v480, %v473
        %v491 = vadd.s32 %v480, %v474
        %v492 = vadd.s32 %v480, %v475
        %v493 = vadd.s32 %v480, %v476
        %v494 = vadd.s32 %v480, %v477
        %v495 = vadd.s32 %v480, %v478
        %v496 = vadd.s32 %v480, %v479
        %vm497 = vcmp.lt.s32.totalorder %v481, 200
        %vm498 = vcmp.lt.s32.totalorder %v482, 200
        %vm499 = vcmp.lt.s32.totalorder %v483, 200
        %vm500 = vcmp.lt.s32.totalorder %v484, 200
        %vm501 = vcmp.lt.s32.totalorder %v485, 200
        %vm502 = vcmp.lt.s32.totalorder %v486, 200
        %vm503 = vcmp.lt.s32.totalorder %v487, 200
        %vm504 = vcmp.lt.s32.totalorder %v488, 200
        %vm505 = vcmp.lt.s32.totalorder %v489, 200
        %vm506 = vcmp.lt.s32.totalorder %v490, 200
        %vm507 = vcmp.lt.s32.totalorder %v491, 200
        %vm508 = vcmp.lt.s32.totalorder %v492, 200
        %vm509 = vcmp.lt.s32.totalorder %v493, 200
        %vm510 = vcmp.lt.s32.totalorder %v494, 200
        %vm511 = vcmp.lt.s32.totalorder %v495, 200
        %vm512 = vcmp.lt.s32.totalorder %v496, 200
        %v513 = vsel %vm497, 1, 0
        %v514 = vsel %vm498, 1, 0
        %v515 = vsel %vm499, 1, 0
        %v516 = vsel %vm500, 1, 0
        %v517 = vsel %vm501, 1, 0
        %v518 = vsel %vm502, 1, 0
        %v519 = vsel %vm503, 1, 0
        %v520 = vsel %vm504, 1, 0
        %v521 = vsel %vm505, 1, 0
        %v522 = vsel %vm506, 1, 0
        %v523 = vsel %vm507, 1, 0
        %v524 = vsel %vm508, 1, 0
        %v525 = vsel %vm509, 1, 0
        %v526 = vsel %vm510, 1, 0
        %v527 = vsel %vm511, 1, 0
        %v528 = vsel %vm512, 1, 0
        %vm529 = vcmp.eq.s32.totalorder %v513, 1
        %vm530 = vcmp.eq.s32.totalorder %v514, 1
        %vm531 = vcmp.eq.s32.totalorder %v515, 1
        %vm532 = vcmp.eq.s32.totalorder %v516, 1
        %vm533 = vcmp.eq.s32.totalorder %v517, 1
        %vm534 = vcmp.eq.s32.totalorder %v518, 1
        %vm535 = vcmp.eq.s32.totalorder %v519, 1
        %vm536 = vcmp.eq.s32.totalorder %v520, 1
        %vm537 = vcmp.eq.s32.totalorder %v521, 1
        %vm538 = vcmp.eq.s32.totalorder %v522, 1
        %vm539 = vcmp.eq.s32.totalorder %v523, 1
        %vm540 = vcmp.eq.s32.totalorder %v524, 1
        %vm541 = vcmp.eq.s32.totalorder %v525, 1
        %vm542 = vcmp.eq.s32.totalorder %v526, 1
        %vm543 = vcmp.eq.s32.totalorder %v527, 1
        %vm544 = vcmp.eq.s32.totalorder %v528, 1
        %v545 = vsel %vm529, %v368, 0.0
        %v546 = vsel %vm530, %v373, 0.0
        %v547 = vsel %vm531, %v378, 0.0
        %v548 = vsel %vm532, %v383, 0.0
        %v549 = vsel %vm533, %v388, 0.0
        %v550 = vsel %vm534, %v393, 0.0
        %v551 = vsel %vm535, %v398, 0.0
        %v552 = vsel %vm536, %v403, 0.0
        %v553 = vsel %vm537, %v408, 0.0
        %v554 = vsel %vm538, %v413, 0.0
        %v555 = vsel %vm539, %v418, 0.0
        %v556 = vsel %vm540, %v423, 0.0
        %v557 = vsel %vm541, %v428, 0.0
        %v558 = vsel %vm542, %v433, 0.0
        %v559 = vsel %vm543, %v438, 0.0
        %v560 = vsel %vm544, %v443, 0.0
        %v561 = vld [vmem:[#allocation8] sm:$0x1]
        %v562 = vadd.f32 %v545, %v546
        %v563 = vadd.f32 %v562, %v547
        %v564 = vadd.f32 %v563, %v548
        %v565 = vadd.f32 %v564, %v549
        %v566 = vadd.f32 %v565, %v550
        %v567 = vadd.f32 %v566, %v551
        %v568 = vadd.f32 %v567, %v552
        %v569 = vadd.f32 %v568, %v553
        %v570 = vadd.f32 %v569, %v554
        %v571 = vadd.f32 %v570, %v555
        %v572 = vadd.f32 %v571, %v556
        %v573 = vadd.f32 %v572, %v557
        %v574 = vadd.f32 %v573, %v558
        %v575 = vadd.f32 %v574, %v559
        %v576 = vadd.f32 %v575, %v560
        %v577 = vrot.slane %v576, 4
        %v578 = vadd.f32 %v576, %v577
        %v579 = vrot.slane %v578, 2
        %v580 = vadd.f32 %v578, %v579
        %v581 = vrot.slane %v580, 1
        %v582 = vadd.f32 %v580, %v581
        %v583 = vadd.f32 %v561, %v582
        %584 = vst [vmem:[#allocation8] sm:$0x1] %v583
        %v585 = vld [vmem:[#allocation10] sm:$0x1]
        %v586 = vmul.f32 %v545, %v545
        %v587 = vmul.f32 %v546, %v546
        %v588 = vmul.f32 %v547, %v547
        %v589 = vmul.f32 %v548, %v548
        %v590 = vmul.f32 %v549, %v549
        %v591 = vmul.f32 %v550, %v550
        %v592 = vmul.f32 %v551, %v551
        %v593 = vmul.f32 %v552, %v552
        %v594 = vmul.f32 %v553, %v553
        %v595 = vmul.f32 %v554, %v554
        %v596 = vmul.f32 %v555, %v555
        %v597 = vmul.f32 %v556, %v556
        %v598 = vmul.f32 %v557, %v557
        %v599 = vmul.f32 %v558, %v558
        %v600 = vmul.f32 %v559, %v559
        %v601 = vmul.f32 %v560, %v560
        %v602 = vadd.f32 %v586, %v587
        %v603 = vadd.f32 %v602, %v588
        %v604 = vadd.f32 %v603, %v589
        %v605 = vadd.f32 %v604, %v590
        %v606 = vadd.f32 %v605, %v591
        %v607 = vadd.f32 %v606, %v592
        %v608 = vadd.f32 %v607, %v593
        %v609 = vadd.f32 %v608, %v594
        %v610 = vadd.f32 %v609, %v595
        %v611 = vadd.f32 %v610, %v596
        %v612 = vadd.f32 %v611, %v597
        %v613 = vadd.f32 %v612, %v598
        %v614 = vadd.f32 %v613, %v599
        %v615 = vadd.f32 %v614, %v600
        %v616 = vadd.f32 %v615, %v601
        %v617 = vrot.slane %v616, 4
        %v618 = vadd.f32 %v616, %v617
        %v619 = vrot.slane %v618, 2
        %v620 = vadd.f32 %v618, %v619
        %v621 = vrot.slane %v620, 1
        %v622 = vadd.f32 %v620, %v621
        %v623 = vadd.f32 %v585, %v622
        %624 = vst [vmem:[#allocation10] sm:$0x1] %v623
        %s625 = sand.u32 %s101, 1
        %s626 = scalar_lea.sflag [#allocation4], %s625
        %s627 = sand.u32 %s101, 1
        %s628 = smul.addr %s627, 128
        %s629 = scalar_lea.vmem [#allocation7], %s628
        // Predicated region
        $region45: #{tpu_custom_call.1} parent=31 // pred_check
          %p630 = pneg %p111
        $region46: #{tpu_custom_call.1} parent=31 // pred_check_branch
          %632 = sbr.rel (%p630) target = $region48
        $region47: #{tpu_custom_call.1} parent=31 // pred_region
          %s633 = smul.u32 16, %s25
          %s635 = ssub.s32 2048, 2048
          %636 = vsyncadd %s626, %s635
          %s637 = smul.addr %s633, 128
          %s638 = scalar_lea.hbm %s3, %s637
          %s639 = sshll.u32 %s629, 4
          %s640 = int_to_ptr.vmem [resolvable:$true] %s639
          %645 = dma.vmem_to_hbm [thread:$0]  %s640, 2048, %s638, %s626, 128, 128, 8
        $region48: #{tpu_custom_call.1} parent=31 // pred_fallthru
          _
        // Predicated region
        $region49: #{tpu_custom_call.1} parent=31 // pred_check
          %p646 = pneg %p132
        $region50: #{tpu_custom_call.1} parent=31 // pred_check_branch
          %648 = sbr.rel (%p646) target = $region52
        $region51: #{tpu_custom_call.1} parent=31 // pred_region
          %s650 = ssub.s32 16, 16
          %651 = vsyncadd [#allocation9], %s650
          %s653 = sshll.u32 [#allocation8], 4
          %s654 = int_to_ptr.vmem [resolvable:$true] %s653
          %656 = dma.vmem_to_hbm [thread:$0]  %s654, 16, %s4, [#allocation9]
        $region52: #{tpu_custom_call.1} parent=31 // pred_fallthru
          _
        // Predicated region
        $region53: #{tpu_custom_call.1} parent=31 // pred_check
          %p657 = pneg %p153
        $region54: #{tpu_custom_call.1} parent=31 // pred_check_branch
          %659 = sbr.rel (%p657) target = $region56
        $region55: #{tpu_custom_call.1} parent=31 // pred_region
          %s661 = ssub.s32 16, 16
          %662 = vsyncadd [#allocation9], %s661
          %s664 = sshll.u32 [#allocation10], 4
          %s665 = int_to_ptr.vmem [resolvable:$true] %s664
          %667 = dma.vmem_to_hbm [thread:$0]  %s665, 16, %s5, [#allocation9]
        $region56: #{tpu_custom_call.1} parent=31 // pred_fallthru
          _
        // Predicated region
        $region57: #{tpu_custom_call.1} parent=31 // pred_check
          %p668 = pneg %p132
        $region58: #{tpu_custom_call.1} parent=31 // pred_check_branch
          %670 = sbr.rel (%p668) target = $region60
        $region59: #{tpu_custom_call.1} parent=31 // pred_region
          %671 = dma.done [#allocation9], 16
        $region60: #{tpu_custom_call.1} parent=31 // pred_fallthru
          _
        // Predicated region
        $region61: #{tpu_custom_call.1} parent=31 // pred_check
          %p672 = pneg %p153
        $region62: #{tpu_custom_call.1} parent=31 // pred_check_branch
          %674 = sbr.rel (%p672) target = $region64
        $region63: #{tpu_custom_call.1} parent=31 // pred_region
          %675 = dma.done [#allocation9], 16
        $region64: #{tpu_custom_call.1} parent=31 // pred_fallthru
          _
      $region32: #{tpu_custom_call.1} parent=5 // pred_fallthru
        _
      %p676 = scmp.le.s32.totalorder 2, %s20
      // Predicated region
      $region65: #{tpu_custom_call.1} parent=5 // pred_check
        %p677 = pneg %p676
      $region66: #{tpu_custom_call.1} parent=5 // pred_check_branch
        %679 = sbr.rel (%p677) target = $region68
      $region67: #{tpu_custom_call.1} parent=5 // pred_region
        %s680 = ssub.s32 %s20, 2
        // Predicated region
        $region69: #{tpu_custom_call.1} parent=67 // pred_check
          %p681 = pneg %p117
        $region70: #{tpu_custom_call.1} parent=67 // pred_check_branch
          %683 = sbr.rel (%p681) target = $region72
        $region71: #{tpu_custom_call.1} parent=67 // pred_region
          %s684 = sand.u32 %s102, 1
          %s685 = scalar_lea.sflag [#allocation4], %s684
          %s686 = sand.u32 %s102, 1
          %s687 = smul.addr %s686, 128
          %s688 = scalar_lea.vmem [#allocation7], %s687
          %689 = dma.done %s685, 2048
        $region72: #{tpu_custom_call.1} parent=67 // pred_fallthru
          _
      $region68: #{tpu_custom_call.1} parent=5 // pred_fallthru
        _
    $region6: #{tpu_custom_call.1} parent=1 // loop_footer
      %s24 = sadd.s32 1, %s20
    $region7: #{tpu_custom_call.1} parent=1 // loop_footer_branch
      %19 = sbr.rel target = $region3
    $region8: #{tpu_custom_call.1} parent=1 // loop_exit
      _
    %690 = vsyncpa [#allocation3], 1
    %s691 = scalar_lea.sflag [#allocation3], 1
    %692 = vsyncpa %s691, 1
    %693 = vsyncpa [#allocation6], 1
    %694 = vsyncpa [#allocation4], 1
    %s695 = scalar_lea.sflag [#allocation4], 1
    %696 = vsyncpa %s695, 1
    %697 = vsyncpa [#allocation9], 1

</llo_original>
